<compile_context>
chip_gen: v6e
topology: v6e:2x2x1
jax: 0.10.0
libtpu: 0.0.40
codegen_flags: <defaults>
</compile_context>

<pallas_src>
import functools

import jax
import jax.numpy as jnp
from jax.experimental import pallas as pl
from jax.experimental.pallas import tpu as pltpu


def _round_up(n, m):
    return ((n + m - 1) // m) * m


def _choose_batch_tiling(batch):
    """Return (tm, padded_batch).

    * B <= 128: a single tile of round_up(B, 16) rows (bf16 sublane pack) --
      minimal padding, minimal per-call work.
    * B  > 128: at least 2 grid steps (so dimension_semantics=("parallel",)
      actually engages both TensorCores on v7x), tiles capped at 512 rows to
      amortize per-grid-step overhead while keeping padding small.
    """
    bp16 = _round_up(batch, 16)
    if bp16 <= 128:
        return bp16, bp16
    n_tiles = max(2, -(-bp16 // 512))
    tm = _round_up(-(-batch // n_tiles), 16)
    return tm, n_tiles * tm


# ---------------------------------------------------------------------------
# Fused landmark-autoencoder forward:
#   code  = enc2( relu( enc1(x) ) )
#   recon = dec2( relu( dec1(code) ) )      (decoder head chosen by decoder_id)
# All 4 matmuls + bias adds + ReLUs in one kernel; intermediates never leave
# VMEM.  bf16 operands on the MXU, f32 accumulation / elementwise.
# ---------------------------------------------------------------------------
def _lm_ae_kernel(did_ref,                      # scalar-prefetch (SMEM), used by index_maps
                  x_ref,
                  we1_ref, be1_ref, we2_ref, be2_ref,
                  wd1_ref, bd1_ref, wd2_ref, bd2_ref,
                  recon_ref, code_ref,
                  xbuf_ref):
    del did_ref  # consumed by the BlockSpec index_maps (decoder-head selection)

    lm_dim = x_ref.shape[-1]

    # Lane-pad x in-kernel (no wrapper-side padded HBM copy).  Zero the whole
    # scratch every step (cheap VMEM stores, and correct regardless of how the
    # grid is sharded across cores), then overwrite the real landmark lanes.
    xbuf_ref[...] = jnp.zeros_like(xbuf_ref)
    xbuf_ref[:, :lm_dim] = x_ref[...].astype(jnp.bfloat16)
    x = xbuf_ref[...]                                                 # bf16 [TM, LMP]

    # ---- lm_encoder ----
    h = jnp.dot(x, we1_ref[...], preferred_element_type=jnp.float32) + be1_ref[...]
    h = jnp.maximum(h, 0.0)                                           # ReLU (f32 VPU)
    z = jnp.dot(h.astype(jnp.bfloat16), we2_ref[...],
                preferred_element_type=jnp.float32) + be2_ref[...]

    # ---- lm_decoder (head already selected via index_map) ----
    hd = jnp.dot(z.astype(jnp.bfloat16), wd1_ref[...],
                 preferred_element_type=jnp.float32) + bd1_ref[...]
    hd = jnp.maximum(hd, 0.0)
    y = jnp.dot(hd.astype(jnp.bfloat16), wd2_ref[...],
                preferred_element_type=jnp.float32) + bd2_ref[...]

    # bf16 writeback halves output HBM traffic (lane-dense: LMP/LAT are
    # multiples of 128, no masked partial stores).
    code_ref[...] = z.astype(code_ref.dtype)
    recon_ref[...] = y.astype(recon_ref.dtype)


@functools.partial(jax.jit, static_argnames=("latent_out",))
def lm_autoencoder_forward(x_lm, params, decoder_id, latent_out):
    """x_lm: [B, LM_DIM] f32 flattened landmarks.  Returns (recon, code) in bf16."""
    B, lm_dim = x_lm.shape
    LMP, HID = params["we1"].shape          # padded lm dim, hidden
    LAT = params["we2"].shape[1]            # padded latent
    dec_num = params["wd1"].shape[0]

    tm, Bp = _choose_batch_tiling(B)
    # Row-only pad (identity when B is already a multiple of the tile rows).
    x_in = jnp.pad(x_lm, ((0, Bp - B), (0, 0))) if Bp != B else x_lm

    # Clamp decoder_id so the head DMA can never go out of bounds.
    did = jnp.clip(jnp.asarray(decoder_id, jnp.int32), 0, dec_num - 1).reshape((1,))

    # Weights stay VMEM-resident across grid steps (constant block index).
    w_spec = lambda shape: pl.BlockSpec(shape, lambda i, d: (0, 0))
    # Per-decoder stacked tensors: pick the head with the prefetched scalar.
    head_spec = lambda shape: pl.BlockSpec((None,) + shape,
                                           lambda i, d: (d[0], 0, 0))

    flops = 2 * Bp * (LMP * HID + HID * LAT + LAT * HID + HID * LMP)
    bytes_accessed = (
        Bp * lm_dim * 4                                              # x (f32 in)
        + (LMP * HID + HID * LAT + LAT * HID + HID * LMP) * 2        # weights (bf16)
        + (HID + LAT + HID + LMP) * 4                                # biases (f32)
        + Bp * (LMP + LAT) * 2                                       # outputs (bf16)
    )

    recon_p, code_p = pl.pallas_call(
        _lm_ae_kernel,
        grid_spec=pltpu.PrefetchScalarGridSpec(
            num_scalar_prefetch=1,
            grid=(Bp // tm,),
            in_specs=[
                pl.BlockSpec((tm, lm_dim), lambda i, d: (i, 0)),    # x tile (unpadded lanes)
                w_spec((LMP, HID)), w_spec((1, HID)),               # enc1
                w_spec((HID, LAT)), w_spec((1, LAT)),               # enc2
                head_spec((LAT, HID)), head_spec((1, HID)),         # dec1 (head)
                head_spec((HID, LMP)), head_spec((1, LMP)),         # dec2 (head)
            ],
            out_specs=[
                pl.BlockSpec((tm, LMP), lambda i, d: (i, 0)),       # recon (lane-dense)
                pl.BlockSpec((tm, LAT), lambda i, d: (i, 0)),       # code  (lane-dense)
            ],
            scratch_shapes=[pltpu.VMEM((tm, LMP), jnp.bfloat16)],   # lane-padded x
        ),
        out_shape=[
            jax.ShapeDtypeStruct((Bp, LMP), jnp.bfloat16),
            jax.ShapeDtypeStruct((Bp, LAT), jnp.bfloat16),
        ],
        compiler_params=pltpu.CompilerParams(
            dimension_semantics=("parallel",)),
        cost_estimate=pl.CostEstimate(flops=flops, transcendentals=0,
                                      bytes_accessed=bytes_accessed),
    )(did, x_in,
      params["we1"], params["be1"], params["we2"], params["be2"],
      params["wd1"], params["bd1"], params["wd2"], params["bd2"])

    # Slice the padding back off (wrapper-side layout plumbing).
    return recon_p[:B, :lm_dim], code_p[:B, :latent_out]


def lm_autoencoder_reference(x_lm, params, decoder_id, latent_out):
    """Pure-JAX reference (same padded bf16 weights) for correctness checking."""
    B, lm_dim = x_lm.shape
    LMP = params["we1"].shape[0]
    x = jnp.zeros((B, LMP), jnp.bfloat16).at[:, :lm_dim].set(x_lm.astype(jnp.bfloat16))
    h = jnp.maximum(
        jnp.dot(x, params["we1"], preferred_element_type=jnp.float32) + params["be1"], 0.0)
    z = jnp.dot(h.astype(jnp.bfloat16), params["we2"],
                preferred_element_type=jnp.float32) + params["be2"]
    wd1 = params["wd1"][decoder_id]
    bd1 = params["bd1"][decoder_id]
    wd2 = params["wd2"][decoder_id]
    bd2 = params["bd2"][decoder_id]
    hd = jnp.maximum(
        jnp.dot(z.astype(jnp.bfloat16), wd1, preferred_element_type=jnp.float32) + bd1, 0.0)
    y = jnp.dot(hd.astype(jnp.bfloat16), wd2, preferred_element_type=jnp.float32) + bd2
    return y[:, :lm_dim], z[:, :latent_out]


# ---------------------------------------------------------------------------
# weights_init('gaussian') semantics: Linear.weight ~ N(0, 0.02), bias = 0.
# Weights are zero-padded to lane-aligned shapes and stored bf16; biases f32.
# NOTE: forward-only path; a training loop would need f32 master weights.
# ---------------------------------------------------------------------------
def init_params(key, lm_dim, hidden, latent, decoder_num):
    lmp = _round_up(lm_dim, 128)
    hid = _round_up(hidden, 128)
    lat = _round_up(latent, 128)
    ks = jax.random.split(key, 4)

    def normal_padded(k, shape, padded_shape):
        w = 0.02 * jax.random.normal(k, shape, dtype=jnp.float32)
        pad = [(0, p - s) for s, p in zip(shape, padded_shape)]
        return jnp.pad(w, pad).astype(jnp.bfloat16)

    return {
        # lm_encoder
        "we1": normal_padded(ks[0], (lm_dim, hidden), (lmp, hid)),
        "be1": jnp.zeros((1, hid), jnp.float32),
        "we2": normal_padded(ks[1], (hidden, latent), (hid, lat)),
        "be2": jnp.zeros((1, lat), jnp.float32),
        # lm_decoder: one head per decoder (decoder_id selects a head)
        "wd1": normal_padded(ks[2], (decoder_num, latent, hidden),
                             (decoder_num, lat, hid)),
        "bd1": jnp.zeros((decoder_num, 1, hid), jnp.float32),
        "wd2": normal_padded(ks[3], (decoder_num, hidden, lm_dim),
                             (decoder_num, hid, lmp)),
        "bd2": jnp.zeros((decoder_num, 1, lmp), jnp.float32),
    }


class TrainerPallas:
    """JAX/Pallas analogue of Trainer (optimizer / checkpoint plumbing omitted)."""

    def __init__(self, decoder_num, lm_dim=136, hidden=128, latent=64, key=None):
        if key is None:
            key = jax.random.PRNGKey(0)
        self.lm_dim = lm_dim
        self.latent = latent
        self.params = init_params(key, lm_dim, hidden, latent, decoder_num)

    def model_forward(self, x_lm, decoder_id):
        """Equivalent of self.model(x_lm, decoder_id, ...): the AE hot path."""
        return lm_autoencoder_forward(x_lm, self.params, decoder_id,
                                      latent_out=self.latent)

    def test(self, x_lm, decoder_id):
        return self.model_forward(x_lm, decoder_id)

    def forward(self, *inputs):
        # Exact semantics of Trainer.forward in the reference module.
        print('Forward function not implemented.')
        return None

    __call__ = forward


if __name__ == "__main__":
    key = jax.random.PRNGKey(0)
    k_param, k_x1, k_x2 = jax.random.split(key, 3)

    LM_DIM = 136     # 68 landmarks * 2 coords, flattened
    HIDDEN = 128
    LATENT = 64
    DECODER_NUM = 2

    trainer = TrainerPallas(DECODER_NUM, LM_DIM, HIDDEN, LATENT, key=k_param)

    # Trainer.forward semantics (no-op, prints message).
    trainer.forward(None)

    # --- Small batch: single 16-row tile, grid=(1,) ------------------------
    B1 = 8
    x1 = jax.random.normal(k_x1, (B1, LM_DIM), dtype=jnp.float32)
    recon1, code1 = trainer.model_forward(x1, 1)
    jax.block_until_ready(recon1)
    jax.block_until_ready(code1)
    assert recon1.shape == (B1, LM_DIM) and code1.shape == (B1, LATENT)
    r_ref1, c_ref1 = lm_autoencoder_reference(x1, trainer.params, 1, LATENT)
    assert jnp.allclose(recon1.astype(jnp.float32), r_ref1, atol=2e-2, rtol=2e-2)
    assert jnp.allclose(code1.astype(jnp.float32), c_ref1, atol=2e-2, rtol=2e-2)
    assert jnp.all(jnp.isfinite(recon1.astype(jnp.float32)))

    # --- Larger batch: grid=(2,) so the 'parallel' batch axis can span both
    # TensorCores on v7x; exercises the other decoder head and row tiling. ---
    B2 = 160
    x2 = jax.random.normal(k_x2, (B2, LM_DIM), dtype=jnp.float32)
    recon2, code2 = trainer.model_forward(x2, 0)
    jax.block_until_ready(recon2)
    jax.block_until_ready(code2)
    assert recon2.shape == (B2, LM_DIM) and code2.shape == (B2, LATENT)
    r_ref2, c_ref2 = lm_autoencoder_reference(x2, trainer.params, 0, LATENT)
    assert jnp.allclose(recon2.astype(jnp.float32), r_ref2, atol=2e-2, rtol=2e-2)
    assert jnp.allclose(code2.astype(jnp.float32), c_ref2, atol=2e-2, rtol=2e-2)
    assert jnp.all(jnp.isfinite(recon2.astype(jnp.float32)))

    print("KERNEL_OK")
</pallas_src>

<mosaic_0001>
module attributes {stable_mosaic.version = 11 : i64} {
  func.func @_lm_ae_kernel(%arg0: i32, %arg1: memref<1xi32, #tpu.memory_space<smem>>, %arg2: memref<16x136xf32, #tpu.memory_space<vmem>>, %arg3: memref<256x128xbf16, #tpu.memory_space<vmem>>, %arg4: memref<1x128xf32, #tpu.memory_space<vmem>>, %arg5: memref<128x128xbf16, #tpu.memory_space<vmem>>, %arg6: memref<1x128xf32, #tpu.memory_space<vmem>>, %arg7: memref<1x128x128xbf16, #tpu.memory_space<vmem>>, %arg8: memref<1x1x128xf32, #tpu.memory_space<vmem>>, %arg9: memref<1x128x256xbf16, #tpu.memory_space<vmem>>, %arg10: memref<1x1x256xf32, #tpu.memory_space<vmem>>, %arg11: memref<16x256xbf16, #tpu.memory_space<vmem>>, %arg12: memref<16x128xbf16, #tpu.memory_space<vmem>>, %arg13: memref<16x256xbf16, #tpu.memory_space<vmem>>) attributes {dimension_semantics = [#tpu.dimension_semantics<parallel>], iteration_bounds = array<i64: 1>, scalar_prefetch = 1 : i64, scratch_operands = 1 : i64, tpu.core_type = #tpu.core_type<tc>, window_params = [{transform_indices = @transform_0, window_bounds = array<i64: 16, 136>}, {pipeline_mode = #tpu.pipeline_mode<synchronous>, transform_indices = @transform_1, window_bounds = array<i64: 256, 128>}, {pipeline_mode = #tpu.pipeline_mode<synchronous>, transform_indices = @transform_2, window_bounds = array<i64: 1, 128>}, {pipeline_mode = #tpu.pipeline_mode<synchronous>, transform_indices = @transform_3, window_bounds = array<i64: 128, 128>}, {pipeline_mode = #tpu.pipeline_mode<synchronous>, transform_indices = @transform_4, window_bounds = array<i64: 1, 128>}, {transform_indices = @transform_5, window_bounds = array<i64: 1, 128, 128>}, {transform_indices = @transform_6, window_bounds = array<i64: 1, 1, 128>}, {transform_indices = @transform_7, window_bounds = array<i64: 1, 128, 256>}, {transform_indices = @transform_8, window_bounds = array<i64: 1, 1, 256>}, {transform_indices = @transform_9, window_bounds = array<i64: 16, 256>}, {transform_indices = @transform_10, window_bounds = array<i64: 16, 128>}]} {
    %cst = arith.constant 0.000000e+00 : bf16
    %0 = vector.broadcast %cst : bf16 to vector<16x256xbf16>
    %c0 = arith.constant 0 : index
    %c0_0 = arith.constant 0 : index
    %1 = vector.load %arg13[%c0, %c0_0] : memref<16x256xbf16, #tpu.memory_space<vmem>>, vector<16x256xbf16>
    tpu.vector_store %arg13[%c0, %c0_0], %0 {strides = array<i32>} : memref<16x256xbf16, #tpu.memory_space<vmem>>, vector<16x256xbf16>,
    %c0_1 = arith.constant 0 : index
    %c0_2 = arith.constant 0 : index
    %2 = vector.load %arg2[%c0_1, %c0_2] : memref<16x136xf32, #tpu.memory_space<vmem>>, vector<16x136xf32>
    %3 = arith.truncf %2 : vector<16x136xf32> to vector<16x136xbf16>
    %c0_3 = arith.constant 0 : index
    %c0_4 = arith.constant 0 : index
    %4 = vector.load %arg13[%c0_3, %c0_4] : memref<16x256xbf16, #tpu.memory_space<vmem>>, vector<16x136xbf16>
    tpu.vector_store %arg13[%c0_3, %c0_4], %3 {strides = array<i32>} : memref<16x256xbf16, #tpu.memory_space<vmem>>, vector<16x136xbf16>,
    %c0_5 = arith.constant 0 : index
    %c0_6 = arith.constant 0 : index
    %5 = vector.load %arg13[%c0_5, %c0_6] : memref<16x256xbf16, #tpu.memory_space<vmem>>, vector<16x256xbf16>
    %c0_7 = arith.constant 0 : index
    %c0_8 = arith.constant 0 : index
    %6 = vector.load %arg3[%c0_7, %c0_8] : memref<256x128xbf16, #tpu.memory_space<vmem>>, vector<256x128xbf16>
    %cst_9 = arith.constant dense<0.000000e+00> : vector<16x128xf32>
    %7 = tpu.matmul %5, %6, %cst_9 {dimension_numbers = #tpu.dot_dimension_numbers<[1], [0], [0], [1], [0, 0, 1, 1], [], []>} : vector<16x256xbf16>, vector<256x128xbf16>, vector<16x128xf32> -> vector<16x128xf32>
    %c0_10 = arith.constant 0 : index
    %c0_11 = arith.constant 0 : index
    %8 = vector.load %arg4[%c0_10, %c0_11] : memref<1x128xf32, #tpu.memory_space<vmem>>, vector<1x128xf32>
    %9 = vector.broadcast %8 : vector<1x128xf32> to vector<16x128xf32>
    %10 = arith.addf %7, %9 : vector<16x128xf32>
    %cst_12 = arith.constant 0.000000e+00 : f32
    %11 = vector.broadcast %cst_12 : f32 to vector<16x128xf32>
    %12 = arith.maximumf %10, %11 : vector<16x128xf32>
    %13 = arith.truncf %12 : vector<16x128xf32> to vector<16x128xbf16>
    %c0_13 = arith.constant 0 : index
    %c0_14 = arith.constant 0 : index
    %14 = vector.load %arg5[%c0_13, %c0_14] : memref<128x128xbf16, #tpu.memory_space<vmem>>, vector<128x128xbf16>
    %cst_15 = arith.constant dense<0.000000e+00> : vector<16x128xf32>
    %15 = tpu.matmul %13, %14, %cst_15 {dimension_numbers = #tpu.dot_dimension_numbers<[1], [0], [0], [1], [0, 0, 1, 1], [], []>} : vector<16x128xbf16>, vector<128x128xbf16>, vector<16x128xf32> -> vector<16x128xf32>
    %c0_16 = arith.constant 0 : index
    %c0_17 = arith.constant 0 : index
    %16 = vector.load %arg6[%c0_16, %c0_17] : memref<1x128xf32, #tpu.memory_space<vmem>>, vector<1x128xf32>
    %17 = vector.broadcast %16 : vector<1x128xf32> to vector<16x128xf32>
    %18 = arith.addf %15, %17 : vector<16x128xf32>
    %19 = arith.truncf %18 : vector<16x128xf32> to vector<16x128xbf16>
    %c0_18 = arith.constant 0 : index
    %c0_19 = arith.constant 0 : index
    %c0_20 = arith.constant 0 : index
    %20 = vector.load %arg7[%c0_18, %c0_19, %c0_20] : memref<1x128x128xbf16, #tpu.memory_space<vmem>>, vector<1x128x128xbf16>
    %21 = vector.shape_cast %20 : vector<1x128x128xbf16> to vector<128x128xbf16>
    %cst_21 = arith.constant dense<0.000000e+00> : vector<16x128xf32>
    %22 = tpu.matmul %19, %21, %cst_21 {dimension_numbers = #tpu.dot_dimension_numbers<[1], [0], [0], [1], [0, 0, 1, 1], [], []>} : vector<16x128xbf16>, vector<128x128xbf16>, vector<16x128xf32> -> vector<16x128xf32>
    %c0_22 = arith.constant 0 : index
    %c0_23 = arith.constant 0 : index
    %c0_24 = arith.constant 0 : index
    %23 = vector.load %arg8[%c0_22, %c0_23, %c0_24] : memref<1x1x128xf32, #tpu.memory_space<vmem>>, vector<1x1x128xf32>
    %24 = vector.shape_cast %23 : vector<1x1x128xf32> to vector<1x128xf32>
    %25 = vector.broadcast %24 : vector<1x128xf32> to vector<16x128xf32>
    %26 = arith.addf %22, %25 : vector<16x128xf32>
    %cst_25 = arith.constant 0.000000e+00 : f32
    %27 = vector.broadcast %cst_25 : f32 to vector<16x128xf32>
    %28 = arith.maximumf %26, %27 : vector<16x128xf32>
    %29 = arith.truncf %28 : vector<16x128xf32> to vector<16x128xbf16>
    %c0_26 = arith.constant 0 : index
    %c0_27 = arith.constant 0 : index
    %c0_28 = arith.constant 0 : index
    %30 = vector.load %arg9[%c0_26, %c0_27, %c0_28] : memref<1x128x256xbf16, #tpu.memory_space<vmem>>, vector<1x128x256xbf16>
    %31 = vector.shape_cast %30 : vector<1x128x256xbf16> to vector<128x256xbf16>
    %cst_29 = arith.constant dense<0.000000e+00> : vector<16x256xf32>
    %32 = tpu.matmul %29, %31, %cst_29 {dimension_numbers = #tpu.dot_dimension_numbers<[1], [0], [0], [1], [0, 0, 1, 1], [], []>} : vector<16x128xbf16>, vector<128x256xbf16>, vector<16x256xf32> -> vector<16x256xf32>
    %c0_30 = arith.constant 0 : index
    %c0_31 = arith.constant 0 : index
    %c0_32 = arith.constant 0 : index
    %33 = vector.load %arg10[%c0_30, %c0_31, %c0_32] : memref<1x1x256xf32, #tpu.memory_space<vmem>>, vector<1x1x256xf32>
    %34 = vector.shape_cast %33 : vector<1x1x256xf32> to vector<1x256xf32>
    %35 = vector.broadcast %34 : vector<1x256xf32> to vector<16x256xf32>
    %36 = arith.addf %32, %35 : vector<16x256xf32>
    %37 = arith.truncf %18 : vector<16x128xf32> to vector<16x128xbf16>
    %c0_33 = arith.constant 0 : index
    %c0_34 = arith.constant 0 : index
    %38 = vector.load %arg12[%c0_33, %c0_34] : memref<16x128xbf16, #tpu.memory_space<vmem>>, vector<16x128xbf16>
    tpu.vector_store %arg12[%c0_33, %c0_34], %37 {strides = array<i32>} : memref<16x128xbf16, #tpu.memory_space<vmem>>, vector<16x128xbf16>,
    %39 = arith.truncf %36 : vector<16x256xf32> to vector<16x256xbf16>
    %c0_35 = arith.constant 0 : index
    %c0_36 = arith.constant 0 : index
    %40 = vector.load %arg11[%c0_35, %c0_36] : memref<16x256xbf16, #tpu.memory_space<vmem>>, vector<16x256xbf16>
    tpu.vector_store %arg11[%c0_35, %c0_36], %39 {strides = array<i32>} : memref<16x256xbf16, #tpu.memory_space<vmem>>, vector<16x256xbf16>,
    return
  }
  func.func @transform_0(%arg0: i32, %arg1: memref<1xi32, #tpu.memory_space<smem>>) -> (i32, i32) {
    %c0_i32 = arith.constant 0 : i32
    %c0_i32_0 = arith.constant 0 : i32
    return %arg0, %c0_i32 : i32, i32
  }
  func.func @transform_1(%arg0: i32, %arg1: memref<1xi32, #tpu.memory_space<smem>>) -> (i32, i32) {
    %c0_i32 = arith.constant 0 : i32
    %c0_i32_0 = arith.constant 0 : i32
    %c0_i32_1 = arith.constant 0 : i32
    return %c0_i32, %c0_i32_0 : i32, i32
  }
  func.func @transform_2(%arg0: i32, %arg1: memref<1xi32, #tpu.memory_space<smem>>) -> (i32, i32) {
    %c0_i32 = arith.constant 0 : i32
    %c0_i32_0 = arith.constant 0 : i32
    %c0_i32_1 = arith.constant 0 : i32
    return %c0_i32, %c0_i32_0 : i32, i32
  }
  func.func @transform_3(%arg0: i32, %arg1: memref<1xi32, #tpu.memory_space<smem>>) -> (i32, i32) {
    %c0_i32 = arith.constant 0 : i32
    %c0_i32_0 = arith.constant 0 : i32
    %c0_i32_1 = arith.constant 0 : i32
    return %c0_i32, %c0_i32_0 : i32, i32
  }
  func.func @transform_4(%arg0: i32, %arg1: memref<1xi32, #tpu.memory_space<smem>>) -> (i32, i32) {
    %c0_i32 = arith.constant 0 : i32
    %c0_i32_0 = arith.constant 0 : i32
    %c0_i32_1 = arith.constant 0 : i32
    return %c0_i32, %c0_i32_0 : i32, i32
  }
  func.func @transform_5(%arg0: i32, %arg1: memref<1xi32, #tpu.memory_space<smem>>) -> (i32, i32, i32) {
    %c0 = arith.constant 0 : index
    %0 = memref.load %arg1[%c0] : memref<1xi32, #tpu.memory_space<smem>>
    %c0_i32 = arith.constant 0 : i32
    %c0_i32_0 = arith.constant 0 : i32
    %c0_i32_1 = arith.constant 0 : i32
    return %0, %c0_i32, %c0_i32_0 : i32, i32, i32
  }
  func.func @transform_6(%arg0: i32, %arg1: memref<1xi32, #tpu.memory_space<smem>>) -> (i32, i32, i32) {
    %c0 = arith.constant 0 : index
    %0 = memref.load %arg1[%c0] : memref<1xi32, #tpu.memory_space<smem>>
    %c0_i32 = arith.constant 0 : i32
    %c0_i32_0 = arith.constant 0 : i32
    %c0_i32_1 = arith.constant 0 : i32
    return %0, %c0_i32, %c0_i32_0 : i32, i32, i32
  }
  func.func @transform_7(%arg0: i32, %arg1: memref<1xi32, #tpu.memory_space<smem>>) -> (i32, i32, i32) {
    %c0 = arith.constant 0 : index
    %0 = memref.load %arg1[%c0] : memref<1xi32, #tpu.memory_space<smem>>
    %c0_i32 = arith.constant 0 : i32
    %c0_i32_0 = arith.constant 0 : i32
    %c0_i32_1 = arith.constant 0 : i32
    return %0, %c0_i32, %c0_i32_0 : i32, i32, i32
  }
  func.func @transform_8(%arg0: i32, %arg1: memref<1xi32, #tpu.memory_space<smem>>) -> (i32, i32, i32) {
    %c0 = arith.constant 0 : index
    %0 = memref.load %arg1[%c0] : memref<1xi32, #tpu.memory_space<smem>>
    %c0_i32 = arith.constant 0 : i32
    %c0_i32_0 = arith.constant 0 : i32
    %c0_i32_1 = arith.constant 0 : i32
    return %0, %c0_i32, %c0_i32_0 : i32, i32, i32
  }
  func.func @transform_9(%arg0: i32, %arg1: memref<1xi32, #tpu.memory_space<smem>>) -> (i32, i32) {
    %c0_i32 = arith.constant 0 : i32
    %c0_i32_0 = arith.constant 0 : i32
    return %arg0, %c0_i32 : i32, i32
  }
  func.func @transform_10(%arg0: i32, %arg1: memref<1xi32, #tpu.memory_space<smem>>) -> (i32, i32) {
    %c0_i32 = arith.constant 0 : i32
    %c0_i32_0 = arith.constant 0 : i32
    return %arg0, %c0_i32 : i32, i32
  }
}

</mosaic_0001>

<llo_original>
// kernel: lm_autoencoder_forward.1
$region0: #{lm_autoencoder_forward.1}
  #allocation0 [shape = 'u32[]', space=smem, size = 0x4, offset = 0x4, fixed_abs, tag = 'smem constant byte address 0x4 - core index']
  #allocation1 [shape = 'u32[144,128]{1,0:T(1,128)}', space=vmem, size = 0x12000, scoped, tag = 'internal scratch']
  #allocation2 [shape = 'bf16[16,256]{1,0:T(8,128)(2,1)}', space=vmem, size = 0x2000, scoped, tag = 'scratch operand']
  #allocation3 [shape = 's32[1]{0}', space=sflag, size = 0x4, scoped, tag = 'scoped memory for lm_autoencoder_forward.1']
  #allocation4 [shape = 's32[1]{0:T(128)S(6)}', space=smem, size = 0x200, scoped, tag = 'prefetched SMEM operand 0']
  %s0 = inlined_call_operand.<no memory space> [shape: s32[1], index: 0, kind: input, shape index: {}]
  %s1 = inlined_call_operand.vmem [shape: f32[16,136], index: 1, kind: input, shape index: {}]
  %s2 = inlined_call_operand.hbm [shape: bf16[256,128], index: 2, kind: input, shape index: {}]
  %s3 = inlined_call_operand.vmem [shape: f32[1,128], index: 3, kind: input, shape index: {}]
  %s4 = inlined_call_operand.vmem [shape: bf16[128,128], index: 4, kind: input, shape index: {}]
  %s5 = inlined_call_operand.vmem [shape: f32[1,128], index: 5, kind: input, shape index: {}]
  %s6 = inlined_call_operand.hbm [shape: bf16[2,128,128], index: 6, kind: input, shape index: {}]
  %s7 = inlined_call_operand.vmem [shape: f32[2,1,128], index: 7, kind: input, shape index: {}]
  %s8 = inlined_call_operand.hbm [shape: bf16[2,128,256], index: 8, kind: input, shape index: {}]
  %s9 = inlined_call_operand.vmem [shape: f32[2,1,256], index: 9, kind: input, shape index: {}]
  %s10 = inlined_call_operand.vmem [shape: bf16[16,256], index: 10, kind: output, shape index: {0}]
  %s11 = inlined_call_operand.vmem [shape: bf16[16,128], index: 11, kind: output, shape index: {1}]
  %12 = xla_tuple %s10, %s11
  %s13 = sld [smem:[#allocation0]]
  $region66: #{lm_autoencoder_forward.1} parent=0
    _
  %s15 = ssub.s32 1, %s13
  %s16 = scalar_select 0, %s15, %s13
  %17 = sst [smem:[#allocation4]] %s0
  $region1: #{lm_autoencoder_forward.1} parent=0
    #allocation5 [shape = 'u8[65536]{0}', space=vmem, size = 0x10000, scoped, tag = 'input window, operand 2, single buffered']
    #allocation6 [shape = 's32[1]{0}', space=sflag, size = 0x4, scoped, tag = 'scoped memory for lm_autoencoder_forward.1']
    #allocation7 [shape = 'u8[32768]{0}', space=vmem, size = 0x8000, scoped, tag = 'input window, operand 6, single buffered']
    #allocation8 [shape = 's32[1]{0}', space=sflag, size = 0x4, scoped, tag = 'scoped memory for lm_autoencoder_forward.1']
    #allocation9 [shape = 'u8[65536]{0}', space=vmem, size = 0x10000, scoped, tag = 'input window, operand 8, single buffered']
    %18 = vsyncpa [#allocation6], 0
    %19 = vsyncpa [#allocation8], 0
    // Predicated region
    $region2: #{lm_autoencoder_forward.1} parent=1 // pred_check
      _
    $region3: #{lm_autoencoder_forward.1} parent=1 // pred_check_branch
      %21 = sbr.rel (0) target = $region5
    $region4: #{lm_autoencoder_forward.1} parent=1 // pred_region
      _
    $region5: #{lm_autoencoder_forward.1} parent=1 // pred_fallthru
      _
    // Predicated region
    $region6: #{lm_autoencoder_forward.1} parent=1 // pred_check
      _
    $region7: #{lm_autoencoder_forward.1} parent=1 // pred_check_branch
      %23 = sbr.rel (0) target = $region9
    $region8: #{lm_autoencoder_forward.1} parent=1 // pred_region
      %s25 = ssub.s32 2048, 2048
      %26 = vsyncadd [#allocation6], %s25
      %s27 = sshll.u32 [#allocation5], 4
      %s28 = int_to_ptr.vmem [resolvable:$true] %s27
      %33 = dma.hbm_to_vmem [thread:$0]  %s2, 2048, %s28, [#allocation6], 64, 64, 4
    $region9: #{lm_autoencoder_forward.1} parent=1 // pred_fallthru
      _
    // Predicated region
    $region10: #{lm_autoencoder_forward.1} parent=1 // pred_check
      _
    $region11: #{lm_autoencoder_forward.1} parent=1 // pred_check_branch
      %35 = sbr.rel (0) target = $region13
    $region12: #{lm_autoencoder_forward.1} parent=1 // pred_region
      _
    $region13: #{lm_autoencoder_forward.1} parent=1 // pred_fallthru
      _
    // Predicated region
    $region14: #{lm_autoencoder_forward.1} parent=1 // pred_check
      _
    $region15: #{lm_autoencoder_forward.1} parent=1 // pred_check_branch
      %37 = sbr.rel (0) target = $region17
    $region16: #{lm_autoencoder_forward.1} parent=1 // pred_region
      _
    $region17: #{lm_autoencoder_forward.1} parent=1 // pred_fallthru
      _
    // Predicated region
    $region18: #{lm_autoencoder_forward.1} parent=1 // pred_check
      _
    $region19: #{lm_autoencoder_forward.1} parent=1 // pred_check_branch
      %39 = sbr.rel (0) target = $region21
    $region20: #{lm_autoencoder_forward.1} parent=1 // pred_region
      _
    $region21: #{lm_autoencoder_forward.1} parent=1 // pred_fallthru
      _
    // Predicated region
    $region22: #{lm_autoencoder_forward.1} parent=1 // pred_check
      _
    $region23: #{lm_autoencoder_forward.1} parent=1 // pred_check_branch
      %41 = sbr.rel (0) target = $region25
    $region24: #{lm_autoencoder_forward.1} parent=1 // pred_region
      %s42 = sld [smem:[#allocation4]]
      %s44 = ssub.s32 1024, 1024
      %45 = vsyncadd [#allocation8], %s44
      %s46 = smul.addr %s42, 16
      %s47 = smul.addr %s46, 64
      %s48 = scalar_lea.hbm %s6, %s47
      %s49 = sshll.u32 [#allocation7], 4
      %s50 = int_to_ptr.vmem [resolvable:$true] %s49
      %55 = dma.hbm_to_vmem [thread:$0]  %s48, 1024, %s50, [#allocation8], 64, 64, 4
    $region25: #{lm_autoencoder_forward.1} parent=1 // pred_fallthru
      _
    // Predicated region
    $region26: #{lm_autoencoder_forward.1} parent=1 // pred_check
      _
    $region27: #{lm_autoencoder_forward.1} parent=1 // pred_check_branch
      %57 = sbr.rel (0) target = $region29
    $region28: #{lm_autoencoder_forward.1} parent=1 // pred_region
      %s58 = sld [smem:[#allocation4]]
      %p59 = scmp.lt.s32.totalorder %s58, 1
      %s60 = scalar_select %p59, %s58, 1
      %s61 = scalar_lea.vmem %s7, %s60
      %s62 = sld [smem:[#allocation4]]
    $region29: #{lm_autoencoder_forward.1} parent=1 // pred_fallthru
      _
    // Predicated region
    $region30: #{lm_autoencoder_forward.1} parent=1 // pred_check
      _
    $region31: #{lm_autoencoder_forward.1} parent=1 // pred_check_branch
      %64 = sbr.rel (0) target = $region33
    $region32: #{lm_autoencoder_forward.1} parent=1 // pred_region
      %s65 = sld [smem:[#allocation4]]
      %s67 = ssub.s32 2048, 2048
      %68 = vsyncadd [#allocation8], %s67
      %s69 = smul.addr %s65, 32
      %s70 = smul.addr %s69, 64
      %s71 = scalar_lea.hbm %s8, %s70
      %s72 = sshll.u32 [#allocation9], 4
      %s73 = int_to_ptr.vmem [resolvable:$true] %s72
      %78 = dma.hbm_to_vmem [thread:$0]  %s71, 2048, %s73, [#allocation8], 128, 128, 8
    $region33: #{lm_autoencoder_forward.1} parent=1 // pred_fallthru
      _
    // Predicated region
    $region34: #{lm_autoencoder_forward.1} parent=1 // pred_check
      _
    $region35: #{lm_autoencoder_forward.1} parent=1 // pred_check_branch
      %80 = sbr.rel (0) target = $region37
    $region36: #{lm_autoencoder_forward.1} parent=1 // pred_region
      %s81 = sld [smem:[#allocation4]]
      %p82 = scmp.lt.s32.totalorder %s81, 1
      %s83 = scalar_select %p82, %s81, 1
      %s84 = smul.addr %s83, 2
      %s85 = scalar_lea.vmem %s9, %s84
      %s86 = sld [smem:[#allocation4]]
    $region37: #{lm_autoencoder_forward.1} parent=1 // pred_fallthru
      _
    // Predicated region
    $region38: #{lm_autoencoder_forward.1} parent=1 // pred_check
      _
    $region39: #{lm_autoencoder_forward.1} parent=1 // pred_check_branch
      %88 = sbr.rel (0) target = $region41
    $region40: #{lm_autoencoder_forward.1} parent=1 // pred_region
      %89 = dma.done [#allocation6], 2048
    $region41: #{lm_autoencoder_forward.1} parent=1 // pred_fallthru
      _
    // Predicated region
    $region42: #{lm_autoencoder_forward.1} parent=1 // pred_check
      _
    $region43: #{lm_autoencoder_forward.1} parent=1 // pred_check_branch
      %91 = sbr.rel (0) target = $region45
    $region44: #{lm_autoencoder_forward.1} parent=1 // pred_region
      %92 = dma.done [#allocation8], 1024
    $region45: #{lm_autoencoder_forward.1} parent=1 // pred_fallthru
      _
    // Predicated region
    $region46: #{lm_autoencoder_forward.1} parent=1 // pred_check
      _
    $region47: #{lm_autoencoder_forward.1} parent=1 // pred_check_branch
      %94 = sbr.rel (0) target = $region49
    $region48: #{lm_autoencoder_forward.1} parent=1 // pred_region
      %95 = dma.done [#allocation8], 2048
    $region49: #{lm_autoencoder_forward.1} parent=1 // pred_fallthru
      _
    %s96 = sld [smem:[#allocation4]]
    %p97 = scmp.lt.s32.totalorder %s96, 1
    %s98 = scalar_select %p97, %s96, 1
    %s99 = scalar_lea.vmem %s7, %s98
    %s100 = sld [smem:[#allocation4]]
    %p101 = scmp.lt.s32.totalorder %s100, 1
    %s102 = scalar_select %p101, %s100, 1
    %s103 = smul.addr %s102, 2
    %s104 = scalar_lea.vmem %s9, %s103
    %s105 = sld [smem:[#allocation4]]
    %s106 = sld [smem:[#allocation4]]
    %p107 = scmp.lt.s32.totalorder %s106, 1
    %s108 = scalar_select %p107, %s106, 1
    %s109 = scalar_lea.vmem %s7, %s108
    %s110 = sld [smem:[#allocation4]]
    %s111 = sld [smem:[#allocation4]]
    %s112 = sld [smem:[#allocation4]]
    %p113 = scmp.lt.s32.totalorder %s112, 1
    %s114 = scalar_select %p113, %s112, 1
    %s115 = smul.addr %s114, 2
    %s116 = scalar_lea.vmem %s9, %s115
    %s117 = sld [smem:[#allocation4]]
    %119 = vst [vmem:[#allocation2] sm:$0xff] 0
    %120 = vst [vmem:[#allocation2 + $0x8] sm:$0xff] 0
    %v121 = vld [vmem:[%s1] sm:$0xff]
    %v122 = vld [vmem:[%s1 + $0x8] sm:$0xff]
    %v123 = vld [vmem:[%s1 + $0x10] sm:$0xff]
    %v124 = vld [vmem:[%s1 + $0x18] sm:$0xff]
    %v125 = vpack.c.bf16 %v123, %v121
    %v126 = vpack.c.bf16 %v124, %v122
    %v129 = vunpack.c.l.b16 %v125
    %v130 = vunpack.c.l.b16 %v126
    %v131 = vunpack.c.h.b16 %v125
    %v132 = vunpack.c.h.b16 %v126
    %v133 = vpack.c.b16 %v130, %v129
    %v134 = vpack.c.b16 %v132, %v131
    %vm137 = vcmask 1043456
    %vm138 = vcmask 64516
    %vm139 = vmor %vm138, %vm137
    %140 = vst.msk [vmem:[#allocation2] sm:$0xff] %vm139, %v133
    %141 = vst.msk [vmem:[#allocation2 + $0x8] sm:$0xff] %vm139, %v134
    %v142 = vld [vmem:[#allocation2] sm:$0xff]
    %v143 = vld [vmem:[#allocation2 + $0x8] sm:$0xff]
    %v144 = vld [vmem:[#allocation5] sm:$0xf]
    %v145 = vld [vmem:[#allocation5 + $0x4] sm:$0xf]
    %v146 = vld [vmem:[#allocation5 + $0x8] sm:$0xf]
    %v147 = vld [vmem:[#allocation5 + $0xc] sm:$0xf]
    %v148 = vld [vmem:[#allocation5 + $0x10] sm:$0xf]
    %v149 = vld [vmem:[#allocation5 + $0x14] sm:$0xf]
    %v150 = vld [vmem:[#allocation5 + $0x18] sm:$0xf]
    %v151 = vld [vmem:[#allocation5 + $0x1c] sm:$0xf]
    %v152 = vld [vmem:[#allocation5 + $0x20] sm:$0xf]
    %v153 = vld [vmem:[#allocation5 + $0x24] sm:$0xf]
    %v154 = vld [vmem:[#allocation5 + $0x28] sm:$0xf]
    %v155 = vld [vmem:[#allocation5 + $0x2c] sm:$0xf]
    %v156 = vld [vmem:[#allocation5 + $0x30] sm:$0xf]
    %v157 = vld [vmem:[#allocation5 + $0x34] sm:$0xf]
    %v158 = vld [vmem:[#allocation5 + $0x38] sm:$0xf]
    %v159 = vld [vmem:[#allocation5 + $0x3c] sm:$0xf]
    %v160 = vld [vmem:[#allocation5 + $0x40] sm:$0xf]
    %v161 = vld [vmem:[#allocation5 + $0x44] sm:$0xf]
    %v162 = vld [vmem:[#allocation5 + $0x48] sm:$0xf]
    %v163 = vld [vmem:[#allocation5 + $0x4c] sm:$0xf]
    %v164 = vld [vmem:[#allocation5 + $0x50] sm:$0xf]
    %v165 = vld [vmem:[#allocation5 + $0x54] sm:$0xf]
    %v166 = vld [vmem:[#allocation5 + $0x58] sm:$0xf]
    %v167 = vld [vmem:[#allocation5 + $0x5c] sm:$0xf]
    %v168 = vld [vmem:[#allocation5 + $0x60] sm:$0xf]
    %v169 = vld [vmem:[#allocation5 + $0x64] sm:$0xf]
    %v170 = vld [vmem:[#allocation5 + $0x68] sm:$0xf]
    %v171 = vld [vmem:[#allocation5 + $0x6c] sm:$0xf]
    %v172 = vld [vmem:[#allocation5 + $0x70] sm:$0xf]
    %v173 = vld [vmem:[#allocation5 + $0x74] sm:$0xf]
    %v174 = vld [vmem:[#allocation5 + $0x78] sm:$0xf]
    %v175 = vld [vmem:[#allocation5 + $0x7c] sm:$0xf]
    %v176 = vld [vmem:[%s3] sm:$0x1]
    %v178 = vlaneseq
    %v179 = vshrl.u32 %v178, 7
    %v180 = vsub.s32 0, %v179
    %v181 = vrot.slane %v176, %v180
    %v185 = vunpack.c.l.b16 %v142
    %v186 = vunpack.c.h.b16 %v142
    %v187 = vunpack.c.l.b16 %v143
    %v188 = vunpack.c.h.b16 %v143
    %v189 = vpack.c.b16 %v187, %v185
    %v190 = vpack.c.b16 %v188, %v186
    %v225 = vunpack.c.l.b16 %v144
    %v226 = vunpack.c.l.b16 %v145
    %v227 = vunpack.c.l.b16 %v146
    %v228 = vunpack.c.l.b16 %v147
    %v229 = vunpack.c.l.b16 %v148
    %v230 = vunpack.c.l.b16 %v149
    %v231 = vunpack.c.l.b16 %v150
    %v232 = vunpack.c.l.b16 %v151
    %v233 = vunpack.c.l.b16 %v152
    %v234 = vunpack.c.l.b16 %v153
    %v235 = vunpack.c.l.b16 %v154
    %v236 = vunpack.c.l.b16 %v155
    %v237 = vunpack.c.l.b16 %v156
    %v238 = vunpack.c.l.b16 %v157
    %v239 = vunpack.c.l.b16 %v158
    %v240 = vunpack.c.l.b16 %v159
    %v241 = vunpack.c.l.b16 %v160
    %v242 = vunpack.c.l.b16 %v161
    %v243 = vunpack.c.l.b16 %v162
    %v244 = vunpack.c.l.b16 %v163
    %v245 = vunpack.c.l.b16 %v164
    %v246 = vunpack.c.l.b16 %v165
    %v247 = vunpack.c.l.b16 %v166
    %v248 = vunpack.c.l.b16 %v167
    %v249 = vunpack.c.l.b16 %v168
    %v250 = vunpack.c.l.b16 %v169
    %v251 = vunpack.c.l.b16 %v170
    %v252 = vunpack.c.l.b16 %v171
    %v253 = vunpack.c.l.b16 %v172
    %v254 = vunpack.c.l.b16 %v173
    %v255 = vunpack.c.l.b16 %v174
    %v256 = vunpack.c.l.b16 %v175
    %v257 = vpack.c.b16 %v226, %v225
    %v258 = vpack.c.b16 %v228, %v227
    %v259 = vpack.c.b16 %v230, %v229
    %v260 = vpack.c.b16 %v232, %v231
    %v261 = vpack.c.b16 %v234, %v233
    %v262 = vpack.c.b16 %v236, %v235
    %v263 = vpack.c.b16 %v238, %v237
    %v264 = vpack.c.b16 %v240, %v239
    %v265 = vpack.c.b16 %v242, %v241
    %v266 = vpack.c.b16 %v244, %v243
    %v267 = vpack.c.b16 %v246, %v245
    %v268 = vpack.c.b16 %v248, %v247
    %v269 = vpack.c.b16 %v250, %v249
    %v270 = vpack.c.b16 %v252, %v251
    %v271 = vpack.c.b16 %v254, %v253
    %v272 = vpack.c.b16 %v256, %v255
    %289 = vmatprep.subr.bf16.mxu0 0
    %290 = vmatpush1.bf16.msra.mxu0 %v264
    %291 = vmatprep.subr.bf16.mxu0 0
    %292 = vmatpush1.bf16.msra.mxu0 %v263
    %293 = vmatprep.subr.bf16.mxu0 0
    %294 = vmatpush1.bf16.msra.mxu0 %v262
    %295 = vmatprep.subr.bf16.mxu0 0
    %296 = vmatpush1.bf16.msra.mxu0 %v261
    %297 = vmatprep.subr.bf16.mxu0 0
    %298 = vmatpush1.bf16.msra.mxu0 %v260
    %299 = vmatprep.subr.bf16.mxu0 0
    %300 = vmatpush1.bf16.msra.mxu0 %v259
    %301 = vmatprep.subr.bf16.mxu0 0
    %302 = vmatpush1.bf16.msra.mxu0 %v258
    %303 = vmatprep.subr.bf16.mxu0 0
    %304 = vmatpush1.bf16.msra.mxu0 %v257
    %305 = vmatprep.subr.bf16.mxu0 0
    %306 = vmatpush2.bf16.msra.mxu0 %v272
    %307 = vmatprep.subr.bf16.mxu0 0
    %308 = vmatpush2.bf16.msra.mxu0 %v271
    %309 = vmatprep.subr.bf16.mxu0 0
    %310 = vmatpush2.bf16.msra.mxu0 %v270
    %311 = vmatprep.subr.bf16.mxu0 0
    %312 = vmatpush2.bf16.msra.mxu0 %v269
    %313 = vmatprep.subr.bf16.mxu0 0
    %314 = vmatpush2.bf16.msra.mxu0 %v268
    %315 = vmatprep.subr.bf16.mxu0 0
    %316 = vmatpush2.bf16.msra.mxu0 %v267
    %317 = vmatprep.subr.bf16.mxu0 0
    %318 = vmatpush2.bf16.msra.mxu0 %v266
    %319 = vmatprep.subr.bf16.mxu0 0
    %320 = vmatpush2.bf16.msra.mxu0 %v265
    %321 = vmatprep.mubr.bf16.mxu0 %v190
    %322 = vmatmul.mubr.bf16.gmra.mxu0 %v189
    %v323 = vpop.f32.mrf.mxu0
    %v324 = vadd.f32 %v181, %v323
    %v325 = vpop.f32.mrf.mxu0
    %v326 = vpop.f32.mrf.mxu0
    %v327 = vadd.f32 %v181, %v326
    %v328 = vpop.f32.mrf.mxu0
    %329 = vdwg.mxu0
    %v330 = vmax.f32 %v324, 0.0
    %v331 = vmax.f32 %v327, 0.0
    %v332 = vpack.c.bf16 %v331, %v330
    %v333 = vld [vmem:[%s4] sm:$0xf]
    %v334 = vld [vmem:[%s4 + $0x4] sm:$0xf]
    %v335 = vld [vmem:[%s4 + $0x8] sm:$0xf]
    %v336 = vld [vmem:[%s4 + $0xc] sm:$0xf]
    %v337 = vld [vmem:[%s4 + $0x10] sm:$0xf]
    %v338 = vld [vmem:[%s4 + $0x14] sm:$0xf]
    %v339 = vld [vmem:[%s4 + $0x18] sm:$0xf]
    %v340 = vld [vmem:[%s4 + $0x1c] sm:$0xf]
    %v341 = vld [vmem:[%s4 + $0x20] sm:$0xf]
    %v342 = vld [vmem:[%s4 + $0x24] sm:$0xf]
    %v343 = vld [vmem:[%s4 + $0x28] sm:$0xf]
    %v344 = vld [vmem:[%s4 + $0x2c] sm:$0xf]
    %v345 = vld [vmem:[%s4 + $0x30] sm:$0xf]
    %v346 = vld [vmem:[%s4 + $0x34] sm:$0xf]
    %v347 = vld [vmem:[%s4 + $0x38] sm:$0xf]
    %v348 = vld [vmem:[%s4 + $0x3c] sm:$0xf]
    %v349 = vld [vmem:[%s5] sm:$0x1]
    %v351 = vlaneseq
    %v352 = vshrl.u32 %v351, 7
    %v353 = vsub.s32 0, %v352
    %v354 = vrot.slane %v349, %v353
    %v372 = vunpack.c.l.b16 %v333
    %v373 = vunpack.c.l.b16 %v334
    %v374 = vunpack.c.l.b16 %v335
    %v375 = vunpack.c.l.b16 %v336
    %v376 = vunpack.c.l.b16 %v337
    %v377 = vunpack.c.l.b16 %v338
    %v378 = vunpack.c.l.b16 %v339
    %v379 = vunpack.c.l.b16 %v340
    %v380 = vunpack.c.l.b16 %v341
    %v381 = vunpack.c.l.b16 %v342
    %v382 = vunpack.c.l.b16 %v343
    %v383 = vunpack.c.l.b16 %v344
    %v384 = vunpack.c.l.b16 %v345
    %v385 = vunpack.c.l.b16 %v346
    %v386 = vunpack.c.l.b16 %v347
    %v387 = vunpack.c.l.b16 %v348
    %v388 = vpack.c.b16 %v373, %v372
    %v389 = vpack.c.b16 %v375, %v374
    %v390 = vpack.c.b16 %v377, %v376
    %v391 = vpack.c.b16 %v379, %v378
    %v392 = vpack.c.b16 %v381, %v380
    %v393 = vpack.c.b16 %v383, %v382
    %v394 = vpack.c.b16 %v385, %v384
    %v395 = vpack.c.b16 %v387, %v386
    %404 = vmatprep.subr.bf16.mxu0 0
    %405 = vmatpush1.bf16.msra.mxu0 %v395
    %406 = vmatprep.subr.bf16.mxu0 0
    %407 = vmatpush1.bf16.msra.mxu0 %v394
    %408 = vmatprep.subr.bf16.mxu0 0
    %409 = vmatpush1.bf16.msra.mxu0 %v393
    %410 = vmatprep.subr.bf16.mxu0 0
    %411 = vmatpush1.bf16.msra.mxu0 %v392
    %412 = vmatprep.subr.bf16.mxu0 0
    %413 = vmatpush1.bf16.msra.mxu0 %v391
    %414 = vmatprep.subr.bf16.mxu0 0
    %415 = vmatpush1.bf16.msra.mxu0 %v390
    %416 = vmatprep.subr.bf16.mxu0 0
    %417 = vmatpush1.bf16.msra.mxu0 %v389
    %418 = vmatprep.subr.bf16.mxu0 0
    %419 = vmatpush1.bf16.msra.mxu0 %v388
    %420 = vmatprep.subr.bf16.mxu0 0
    %421 = vmatpush2.bf16.msra.mxu0 0
    %422 = vmatprep.subr.bf16.mxu0 0
    %423 = vmatpush2.bf16.msra.mxu0 0
    %424 = vmatprep.subr.bf16.mxu0 0
    %425 = vmatpush2.bf16.msra.mxu0 0
    %426 = vmatprep.subr.bf16.mxu0 0
    %427 = vmatpush2.bf16.msra.mxu0 0
    %428 = vmatprep.subr.bf16.mxu0 0
    %429 = vmatpush2.bf16.msra.mxu0 0
    %430 = vmatprep.subr.bf16.mxu0 0
    %431 = vmatpush2.bf16.msra.mxu0 0
    %432 = vmatprep.subr.bf16.mxu0 0
    %433 = vmatpush2.bf16.msra.mxu0 0
    %434 = vmatprep.subr.bf16.mxu0 0
    %435 = vmatpush2.bf16.msra.mxu0 0
    %436 = vmatprep.mubr.bf16.mxu0 0
    %437 = vmatmul.mubr.bf16.gmra.mxu0 %v332
    %v438 = vpop.f32.mrf.mxu0
    %v439 = vadd.f32 %v354, %v438
    %v440 = vpop.f32.mrf.mxu0
    %v441 = vpop.f32.mrf.mxu0
    %v442 = vadd.f32 %v354, %v441
    %v443 = vpop.f32.mrf.mxu0
    %444 = vdwg.mxu0
    %v445 = vpack.c.bf16 %v442, %v439
    %v446 = vld [vmem:[#allocation7] sm:$0xf]
    %v447 = vld [vmem:[#allocation7 + $0x4] sm:$0xf]
    %v448 = vld [vmem:[#allocation7 + $0x8] sm:$0xf]
    %v449 = vld [vmem:[#allocation7 + $0xc] sm:$0xf]
    %v450 = vld [vmem:[#allocation7 + $0x10] sm:$0xf]
    %v451 = vld [vmem:[#allocation7 + $0x14] sm:$0xf]
    %v452 = vld [vmem:[#allocation7 + $0x18] sm:$0xf]
    %v453 = vld [vmem:[#allocation7 + $0x1c] sm:$0xf]
    %v454 = vld [vmem:[#allocation7 + $0x20] sm:$0xf]
    %v455 = vld [vmem:[#allocation7 + $0x24] sm:$0xf]
    %v456 = vld [vmem:[#allocation7 + $0x28] sm:$0xf]
    %v457 = vld [vmem:[#allocation7 + $0x2c] sm:$0xf]
    %v458 = vld [vmem:[#allocation7 + $0x30] sm:$0xf]
    %v459 = vld [vmem:[#allocation7 + $0x34] sm:$0xf]
    %v460 = vld [vmem:[#allocation7 + $0x38] sm:$0xf]
    %v461 = vld [vmem:[#allocation7 + $0x3c] sm:$0xf]
    %v462 = vld [vmem:[%s109] sm:$0x1]
    %v464 = vlaneseq
    %v465 = vshrl.u32 %v464, 7
    %v466 = vsub.s32 0, %v465
    %v467 = vrot.slane %v462, %v466
    %v485 = vunpack.c.l.b16 %v446
    %v486 = vunpack.c.l.b16 %v447
    %v487 = vunpack.c.l.b16 %v448
    %v488 = vunpack.c.l.b16 %v449
    %v489 = vunpack.c.l.b16 %v450
    %v490 = vunpack.c.l.b16 %v451
    %v491 = vunpack.c.l.b16 %v452
    %v492 = vunpack.c.l.b16 %v453
    %v493 = vunpack.c.l.b16 %v454
    %v494 = vunpack.c.l.b16 %v455
    %v495 = vunpack.c.l.b16 %v456
    %v496 = vunpack.c.l.b16 %v457
    %v497 = vunpack.c.l.b16 %v458
    %v498 = vunpack.c.l.b16 %v459
    %v499 = vunpack.c.l.b16 %v460
    %v500 = vunpack.c.l.b16 %v461
    %v501 = vpack.c.b16 %v486, %v485
    %v502 = vpack.c.b16 %v488, %v487
    %v503 = vpack.c.b16 %v490, %v489
    %v504 = vpack.c.b16 %v492, %v491
    %v505 = vpack.c.b16 %v494, %v493
    %v506 = vpack.c.b16 %v496, %v495
    %v507 = vpack.c.b16 %v498, %v497
    %v508 = vpack.c.b16 %v500, %v499
    %517 = vmatprep.subr.bf16.mxu0 0
    %518 = vmatpush1.bf16.msra.mxu0 %v508
    %519 = vmatprep.subr.bf16.mxu0 0
    %520 = vmatpush1.bf16.msra.mxu0 %v507
    %521 = vmatprep.subr.bf16.mxu0 0
    %522 = vmatpush1.bf16.msra.mxu0 %v506
    %523 = vmatprep.subr.bf16.mxu0 0
    %524 = vmatpush1.bf16.msra.mxu0 %v505
    %525 = vmatprep.subr.bf16.mxu0 0
    %526 = vmatpush1.bf16.msra.mxu0 %v504
    %527 = vmatprep.subr.bf16.mxu0 0
    %528 = vmatpush1.bf16.msra.mxu0 %v503
    %529 = vmatprep.subr.bf16.mxu0 0
    %530 = vmatpush1.bf16.msra.mxu0 %v502
    %531 = vmatprep.subr.bf16.mxu0 0
    %532 = vmatpush1.bf16.msra.mxu0 %v501
    %533 = vmatprep.subr.bf16.mxu0 0
    %534 = vmatpush2.bf16.msra.mxu0 0
    %535 = vmatprep.subr.bf16.mxu0 0
    %536 = vmatpush2.bf16.msra.mxu0 0
    %537 = vmatprep.subr.bf16.mxu0 0
    %538 = vmatpush2.bf16.msra.mxu0 0
    %539 = vmatprep.subr.bf16.mxu0 0
    %540 = vmatpush2.bf16.msra.mxu0 0
    %541 = vmatprep.subr.bf16.mxu0 0
    %542 = vmatpush2.bf16.msra.mxu0 0
    %543 = vmatprep.subr.bf16.mxu0 0
    %544 = vmatpush2.bf16.msra.mxu0 0
    %545 = vmatprep.subr.bf16.mxu0 0
    %546 = vmatpush2.bf16.msra.mxu0 0
    %547 = vmatprep.subr.bf16.mxu0 0
    %548 = vmatpush2.bf16.msra.mxu0 0
    %549 = vmatprep.mubr.bf16.mxu0 0
    %550 = vmatmul.mubr.bf16.gmra.mxu0 %v445
    %v551 = vpop.f32.mrf.mxu0
    %v552 = vadd.f32 %v467, %v551
    %v553 = vpop.f32.mrf.mxu0
    %v554 = vpop.f32.mrf.mxu0
    %v555 = vadd.f32 %v467, %v554
    %v556 = vpop.f32.mrf.mxu0
    %557 = vdwg.mxu0
    %v558 = vmax.f32 %v552, 0.0
    %v559 = vmax.f32 %v555, 0.0
    %v560 = vpack.c.bf16 %v559, %v558
    %v561 = vld [vmem:[#allocation9] sm:$0xff]
    %v562 = vld [vmem:[#allocation9 + $0x8] sm:$0xff]
    %v563 = vld [vmem:[#allocation9 + $0x10] sm:$0xff]
    %v564 = vld [vmem:[#allocation9 + $0x18] sm:$0xff]
    %v565 = vld [vmem:[#allocation9 + $0x20] sm:$0xff]
    %v566 = vld [vmem:[#allocation9 + $0x28] sm:$0xff]
    %v567 = vld [vmem:[#allocation9 + $0x30] sm:$0xff]
    %v568 = vld [vmem:[#allocation9 + $0x38] sm:$0xff]
    %v569 = vld [vmem:[#allocation9 + $0x40] sm:$0xff]
    %v570 = vld [vmem:[#allocation9 + $0x48] sm:$0xff]
    %v571 = vld [vmem:[#allocation9 + $0x50] sm:$0xff]
    %v572 = vld [vmem:[#allocation9 + $0x58] sm:$0xff]
    %v573 = vld [vmem:[#allocation9 + $0x60] sm:$0xff]
    %v574 = vld [vmem:[#allocation9 + $0x68] sm:$0xff]
    %v575 = vld [vmem:[#allocation9 + $0x70] sm:$0xff]
    %v576 = vld [vmem:[#allocation9 + $0x78] sm:$0xff]
    %v577 = vld [vmem:[%s116] sm:$0x3]
    %v579 = vlaneseq
    %v580 = vshrl.u32 %v579, 7
    %v581 = vsub.s32 0, %v580
    %v582 = vrot.slane %v577, %v581
    %v583 = vlaneseq
    %v584 = vshrl.u32 %v583, 7
    %v585 = vsub.s32 1, %v584
    %v586 = vrot.slane %v577, %v585
    %v605 = vunpack.c.l.b16 %v561
    %v606 = vunpack.c.h.b16 %v561
    %v607 = vunpack.c.l.b16 %v562
    %v608 = vunpack.c.h.b16 %v562
    %v609 = vunpack.c.l.b16 %v563
    %v610 = vunpack.c.h.b16 %v563
    %v611 = vunpack.c.l.b16 %v564
    %v612 = vunpack.c.h.b16 %v564
    %v613 = vunpack.c.l.b16 %v565
    %v614 = vunpack.c.h.b16 %v565
    %v615 = vunpack.c.l.b16 %v566
    %v616 = vunpack.c.h.b16 %v566
    %v617 = vunpack.c.l.b16 %v567
    %v618 = vunpack.c.h.b16 %v567
    %v619 = vunpack.c.l.b16 %v568
    %v620 = vunpack.c.h.b16 %v568
    %v621 = vunpack.c.l.b16 %v569
    %v622 = vunpack.c.h.b16 %v569
    %v623 = vunpack.c.l.b16 %v570
    %v624 = vunpack.c.h.b16 %v570
    %v625 = vunpack.c.l.b16 %v571
    %v626 = vunpack.c.h.b16 %v571
    %v627 = vunpack.c.l.b16 %v572
    %v628 = vunpack.c.h.b16 %v572
    %v629 = vunpack.c.l.b16 %v573
    %v630 = vunpack.c.h.b16 %v573
    %v631 = vunpack.c.l.b16 %v574
    %v632 = vunpack.c.h.b16 %v574
    %v633 = vunpack.c.l.b16 %v575
    %v634 = vunpack.c.h.b16 %v575
    %v635 = vunpack.c.l.b16 %v576
    %v636 = vunpack.c.h.b16 %v576
    %v637 = vpack.c.b16 %v607, %v605
    %v638 = vpack.c.b16 %v608, %v606
    %v639 = vpack.c.b16 %v611, %v609
    %v640 = vpack.c.b16 %v612, %v610
    %v641 = vpack.c.b16 %v615, %v613
    %v642 = vpack.c.b16 %v616, %v614
    %v643 = vpack.c.b16 %v619, %v617
    %v644 = vpack.c.b16 %v620, %v618
    %v645 = vpack.c.b16 %v623, %v621
    %v646 = vpack.c.b16 %v624, %v622
    %v647 = vpack.c.b16 %v627, %v625
    %v648 = vpack.c.b16 %v628, %v626
    %v649 = vpack.c.b16 %v631, %v629
    %v650 = vpack.c.b16 %v632, %v630
    %v651 = vpack.c.b16 %v635, %v633
    %v652 = vpack.c.b16 %v636, %v634
    %669 = vmatprep.subr.bf16.mxu0 %v652
    %670 = vmatpush1.bf16.msra.mxu0 %v651
    %671 = vmatprep.subr.bf16.mxu0 %v650
    %672 = vmatpush1.bf16.msra.mxu0 %v649
    %673 = vmatprep.subr.bf16.mxu0 %v648
    %674 = vmatpush1.bf16.msra.mxu0 %v647
    %675 = vmatprep.subr.bf16.mxu0 %v646
    %676 = vmatpush1.bf16.msra.mxu0 %v645
    %677 = vmatprep.subr.bf16.mxu0 %v644
    %678 = vmatpush1.bf16.msra.mxu0 %v643
    %679 = vmatprep.subr.bf16.mxu0 %v642
    %680 = vmatpush1.bf16.msra.mxu0 %v641
    %681 = vmatprep.subr.bf16.mxu0 %v640
    %682 = vmatpush1.bf16.msra.mxu0 %v639
    %683 = vmatprep.subr.bf16.mxu0 %v638
    %684 = vmatpush1.bf16.msra.mxu0 %v637
    %685 = vmatprep.subr.bf16.mxu0 0
    %686 = vmatpush2.bf16.msra.mxu0 0
    %687 = vmatprep.subr.bf16.mxu0 0
    %688 = vmatpush2.bf16.msra.mxu0 0
    %689 = vmatprep.subr.bf16.mxu0 0
    %690 = vmatpush2.bf16.msra.mxu0 0
    %691 = vmatprep.subr.bf16.mxu0 0
    %692 = vmatpush2.bf16.msra.mxu0 0
    %693 = vmatprep.subr.bf16.mxu0 0
    %694 = vmatpush2.bf16.msra.mxu0 0
    %695 = vmatprep.subr.bf16.mxu0 0
    %696 = vmatpush2.bf16.msra.mxu0 0
    %697 = vmatprep.subr.bf16.mxu0 0
    %698 = vmatpush2.bf16.msra.mxu0 0
    %699 = vmatprep.subr.bf16.mxu0 0
    %700 = vmatpush2.bf16.msra.mxu0 0
    %701 = vmatprep.mubr.bf16.mxu0 0
    %702 = vmatmul.mubr.bf16.gmra.mxu0 %v560
    %v703 = vpop.f32.mrf.mxu0
    %v704 = vadd.f32 %v582, %v703
    %v705 = vpop.f32.mrf.mxu0
    %v706 = vadd.f32 %v586, %v705
    %v707 = vpop.f32.mrf.mxu0
    %v708 = vadd.f32 %v582, %v707
    %v709 = vpop.f32.mrf.mxu0
    %v710 = vadd.f32 %v586, %v709
    %711 = vdwg.mxu0
    %v713 = vunpack.c.l.b16 %v445
    %v714 = vunpack.c.h.b16 %v445
    %v715 = vpack.c.b16 %v713, %v713
    %v716 = vpack.c.b16 %v714, %v714
    %719 = vst [vmem:[%s11] sm:$0xf] %v715
    %720 = vst [vmem:[%s11 + $0x4] sm:$0xf] %v716
    %v721 = vpack.c.bf16 %v708, %v704
    %v722 = vpack.c.bf16 %v710, %v706
    %v725 = vunpack.c.l.b16 %v721
    %v726 = vunpack.c.l.b16 %v722
    %v727 = vunpack.c.h.b16 %v721
    %v728 = vunpack.c.h.b16 %v722
    %v729 = vpack.c.b16 %v726, %v725
    %v730 = vpack.c.b16 %v728, %v727
    %733 = vst [vmem:[%s10] sm:$0xff] %v729
    %734 = vst [vmem:[%s10 + $0x8] sm:$0xff] %v730
    // Predicated region
    $region50: #{lm_autoencoder_forward.1} parent=1 // pred_check
      _
    $region51: #{lm_autoencoder_forward.1} parent=1 // pred_check_branch
      %736 = sbr.rel (0) target = $region53
    $region52: #{lm_autoencoder_forward.1} parent=1 // pred_region
      _
    $region53: #{lm_autoencoder_forward.1} parent=1 // pred_fallthru
      _
    // Predicated region
    $region54: #{lm_autoencoder_forward.1} parent=1 // pred_check
      _
    $region55: #{lm_autoencoder_forward.1} parent=1 // pred_check_branch
      %738 = sbr.rel (0) target = $region57
    $region56: #{lm_autoencoder_forward.1} parent=1 // pred_region
      _
    $region57: #{lm_autoencoder_forward.1} parent=1 // pred_fallthru
      _
    // Predicated region
    $region58: #{lm_autoencoder_forward.1} parent=1 // pred_check
      _
    $region59: #{lm_autoencoder_forward.1} parent=1 // pred_check_branch
      %740 = sbr.rel (0) target = $region61
    $region60: #{lm_autoencoder_forward.1} parent=1 // pred_region
      _
    $region61: #{lm_autoencoder_forward.1} parent=1 // pred_fallthru
      _
    // Predicated region
    $region62: #{lm_autoencoder_forward.1} parent=1 // pred_check
      _
    $region63: #{lm_autoencoder_forward.1} parent=1 // pred_check_branch
      %742 = sbr.rel (0) target = $region65
    $region64: #{lm_autoencoder_forward.1} parent=1 // pred_region
      _
    $region65: #{lm_autoencoder_forward.1} parent=1 // pred_fallthru
      _
    %743 = vsyncpa [#allocation6], 1
    %744 = vsyncpa [#allocation8], 1

</llo_original>
